<compile_context>
chip_gen: v7x
topology: tpu7x:2x2x1
jax: 0.10.0
libtpu: 0.0.40
codegen_flags: <defaults>
</compile_context>

<pallas_src>
import functools

import jax
import jax.numpy as jnp
from jax.experimental import pallas as pl
from jax.experimental.pallas import tpu as pltpu

VMEM = pltpu.MemorySpace.VMEM
LANES = 128  # lane-dense width of every packed slab / output


def _round_up(x, m):
    return (x + m - 1) // m * m


def _wr_layout(enc_hidden, r_dim, z_dim, h_dim):
    """Row offsets of each weight block inside the stacked bf16 weight slab."""
    blocks = [("enc_w2", enc_hidden), ("ne_wh", r_dim), ("ne_whead", r_dim),
              ("dec_w1z", z_dim), ("dec_w2", h_dim), ("dec_whead", h_dim)]
    offs, o = {}, 0
    for name, rows in blocks:
        offs[name] = o
        o += _round_up(rows, 16)          # keep bf16 sublane-packing alignment
    return offs, _round_up(o, 16)


# ------------------------------------------------------------ fused kernel ---
def _np_fused_kernel(x_ref, yc_ref, sm_ref, w1_ref, wr_ref, out_ref, *,
                     B_c, B_t, shared_x, enc_hidden, r_dim, z_dim, h_dim, y_dim,
                     offs):
    # sm_ref rows: 0 enc_b1 | 1 enc_w1_lbl | 2 enc_b2 | 3 ne_bh | 4 ne_bhead
    #              5 dec_b1 | 6 dec_b2 | 7 dec_bhead | 8 eps
    enc_b1 = sm_ref[0:1, :enc_hidden]
    w1_lbl = sm_ref[1:2, :enc_hidden]
    enc_b2 = sm_ref[2:3, :r_dim]
    ne_bh = sm_ref[3:4, :r_dim]
    ne_bhead = sm_ref[4:5, :]
    dec_b1 = sm_ref[5:6, :h_dim]
    dec_b2 = sm_ref[6:7, :h_dim]
    dec_bhead = sm_ref[7:8, :]
    eps = sm_ref[8:9, :z_dim]

    # ---- fused first layer: X @ [enc_w1_img | dec_w1x]  (single K=768 matmul) ----
    w1 = w1_ref[...].astype(jnp.float32)
    g = jnp.dot(x_ref[...], w1, preferred_element_type=jnp.float32)   # [B_all, 128]
    if shared_x:                     # training path: encoder rows == decoder rows
        g_enc = g[:, :enc_hidden]
        g_dec = g[:, enc_hidden:enc_hidden + h_dim]
    else:                            # inference path: rows stacked [context ; target]
        g_enc = g[:B_c, :enc_hidden]
        g_dec = g[B_c:B_c + B_t, enc_hidden:enc_hidden + h_dim]

    # ---------------- Encoder on the (context) set ----------------
    # label contribution is a VPU outer-product add (keeps K at 768, 128-aligned)
    h = jnp.maximum(g_enc + yc_ref[...] * w1_lbl + enc_b1, 0.0)
    enc_w2 = wr_ref[offs["enc_w2"]:offs["enc_w2"] + enc_hidden, :r_dim].astype(jnp.float32)
    r = jnp.dot(h, enc_w2, preferred_element_type=jnp.float32) + enc_b2

    # ---------------- aggregate (mean over set) + NormalEncoder ----------------
    r_bar = jnp.mean(r, axis=0, keepdims=True)                        # [1, r_dim]
    ne_wh = wr_ref[offs["ne_wh"]:offs["ne_wh"] + r_dim, :r_dim].astype(jnp.float32)
    hn = jnp.maximum(jnp.dot(r_bar, ne_wh, preferred_element_type=jnp.float32) + ne_bh, 0.0)
    ne_whead = wr_ref[offs["ne_whead"]:offs["ne_whead"] + r_dim, :].astype(jnp.float32)
    head = jnp.dot(hn, ne_whead, preferred_element_type=jnp.float32) + ne_bhead  # [1,128]
    sig_all = 0.1 + 0.9 * jax.nn.sigmoid(head)
    lane = jax.lax.broadcasted_iota(jnp.int32, head.shape, 1)
    out_ref[0:1, :] = jnp.where((lane >= z_dim) & (lane < 2 * z_dim), sig_all, head)

    mu = head[:, :z_dim]                                               # [1, z_dim]
    sigma = sig_all[:, z_dim:2 * z_dim]                                # [1, z_dim]

    # ---------------- rsample + Decoder ----------------
    z = mu + sigma * eps                                               # [1, z_dim]
    dec_w1z = wr_ref[offs["dec_w1z"]:offs["dec_w1z"] + z_dim, :h_dim].astype(jnp.float32)
    b1_eff = jnp.dot(z, dec_w1z, preferred_element_type=jnp.float32) + dec_b1   # [1, h_dim]
    h1 = jnp.maximum(g_dec + b1_eff, 0.0)
    dec_w2 = wr_ref[offs["dec_w2"]:offs["dec_w2"] + h_dim, :h_dim].astype(jnp.float32)
    h2 = jnp.maximum(jnp.dot(h1, dec_w2, preferred_element_type=jnp.float32) + dec_b2, 0.0)
    dec_whead = wr_ref[offs["dec_whead"]:offs["dec_whead"] + h_dim, :].astype(jnp.float32)
    dhead = jnp.dot(h2, dec_whead, preferred_element_type=jnp.float32) + dec_bhead  # [B_t,128]
    soft = 0.1 + 0.9 * jax.nn.softplus(dhead)
    lane_d = jax.lax.broadcasted_iota(jnp.int32, dhead.shape, 1)
    out_ref[1:1 + B_t, :] = jnp.where((lane_d >= y_dim) & (lane_d < 2 * y_dim), soft, dhead)


# ------------------------------------------------------------ param packing ---
def pack_params(p):
    """Pack the per-layer params into 3 lane-dense slabs (2x bf16 weights, 1x f32 rows)."""
    in_dim, enc_hidden = p["enc_w1_img"].shape
    r_dim = p["enc_w2"].shape[1]
    z_dim = p["ne_wmu"].shape[1]
    h_dim = p["dec_w1x"].shape[1]
    y_dim = p["dec_wmu"].shape[1]
    assert 2 * z_dim <= LANES, "packed mu|sigma latent head overflows 128 lanes"
    assert 2 * y_dim <= LANES, "packed mu|sigma decoder head overflows 128 lanes"
    assert enc_hidden + h_dim <= LANES, "fused first-layer slab overflows 128 lanes"

    def pad_lanes(a):
        return jnp.pad(a, ((0, 0), (0, LANES - a.shape[1])))

    # fused first-layer weights: [enc_w1_img | dec_w1x] -> (in_dim, 128), bf16
    w1 = pad_lanes(jnp.concatenate([p["enc_w1_img"], p["dec_w1x"]], axis=1)
                   ).astype(jnp.bfloat16)

    # remaining weights stacked along rows (16-row aligned), zero-padded to 128 lanes, bf16
    offs, total = _wr_layout(enc_hidden, r_dim, z_dim, h_dim)
    blocks = {
        "enc_w2": p["enc_w2"],
        "ne_wh": p["ne_wh"],
        "ne_whead": jnp.concatenate([p["ne_wmu"], p["ne_ws"]], axis=1),
        "dec_w1z": p["dec_w1z"],
        "dec_w2": p["dec_w2"],
        "dec_whead": jnp.concatenate([p["dec_wmu"], p["dec_ws"]], axis=1),
    }
    wr = jnp.zeros((total, LANES), jnp.float32)
    for name, w in blocks.items():
        wr = wr.at[offs[name]:offs[name] + w.shape[0], :w.shape[1]].set(w)
    wr = wr.astype(jnp.bfloat16)

    # all (1, N) rows -> one f32 (8,128) slab (eps row appended per call)
    bias8 = jnp.concatenate([
        pad_lanes(p["enc_b1"]), pad_lanes(p["enc_w1_lbl"]), pad_lanes(p["enc_b2"]),
        pad_lanes(p["ne_bh"]),
        pad_lanes(jnp.concatenate([p["ne_bmu"], p["ne_bs"]], axis=1)),
        pad_lanes(p["dec_b1"]), pad_lanes(p["dec_b2"]),
        pad_lanes(jnp.concatenate([p["dec_bmu"], p["dec_bs"]], axis=1)),
    ], axis=0)

    dims = dict(in_dim=in_dim, enc_hidden=enc_hidden, r_dim=r_dim,
                z_dim=z_dim, h_dim=h_dim, y_dim=y_dim)
    packed = {"w1": w1, "wr": wr, "bias8": bias8}
    return packed, dims


# ------------------------------------------------------------ forward glue ---
def neural_process_forward(packed, img_context, y_context, img_target, eps,
                           y_target=None, *, dims):
    """Returns (y_pred_mu, y_pred_sigma, mu, sigma) mirroring the PyTorch forward.
    Normal distributions are represented by their (mu, sigma); rsample uses the
    explicit standard-normal draw `eps`."""
    enc_hidden, r_dim, z_dim, h_dim, y_dim = (
        dims["enc_hidden"], dims["r_dim"], dims["z_dim"], dims["h_dim"], dims["y_dim"])
    B_t = img_target.shape[0]
    xt = img_target.reshape(B_t, -1)
    if y_target is not None:
        # Training path: z sampled from q_target; encoder set == decoder set, so the
        # image is passed ONCE and both first-layer matmuls share the same rows.
        # TODO(synk): q_context for the KL term is plain-JAX loss code outside the kernel.
        x_all, yc, B_c, shared_x = xt, y_target, B_t, True
    else:
        B_c = img_context.shape[0]
        xc = img_context.reshape(B_c, -1)
        x_all = jnp.concatenate([xc, xt], axis=0)      # stacked rows -> one fused matmul
        yc, shared_x = y_context, False

    # append the eps row to the f32 bias slab -> single small-vector DMA
    sm = jnp.concatenate(
        [packed["bias8"], jnp.pad(eps, ((0, 0), (0, LANES - z_dim)))], axis=0)

    offs, _ = _wr_layout(enc_hidden, r_dim, z_dim, h_dim)
    kernel = functools.partial(
        _np_fused_kernel, B_c=B_c, B_t=B_t, shared_x=shared_x,
        enc_hidden=enc_hidden, r_dim=r_dim, z_dim=z_dim, h_dim=h_dim, y_dim=y_dim,
        offs=offs)

    out = pl.pallas_call(
        kernel,
        out_shape=jax.ShapeDtypeStruct((1 + B_t, LANES), jnp.float32),
        in_specs=[pl.BlockSpec(memory_space=VMEM)] * 5,
        out_specs=pl.BlockSpec(memory_space=VMEM),
    )(x_all, yc, sm, packed["w1"], packed["wr"])

    mu = out[0:1, :z_dim]
    sigma = out[0:1, z_dim:2 * z_dim]
    y_mu = out[1:, :y_dim]
    y_sigma = out[1:, y_dim:2 * y_dim]
    return y_mu, y_sigma, mu, sigma


# ------------------------------------------------------------ pure-JAX ref ---
def ref_forward(p, img_enc, y_enc, img_dec, eps):
    xe = img_enc.reshape(img_enc.shape[0], -1)
    h = jnp.maximum(xe @ p["enc_w1_img"] + y_enc * p["enc_w1_lbl"] + p["enc_b1"], 0.0)
    r = h @ p["enc_w2"] + p["enc_b2"]
    r = jnp.mean(r, axis=0, keepdims=True)
    hh = jnp.maximum(r @ p["ne_wh"] + p["ne_bh"], 0.0)
    mu = hh @ p["ne_wmu"] + p["ne_bmu"]
    sigma = 0.1 + 0.9 * jax.nn.sigmoid(hh @ p["ne_ws"] + p["ne_bs"])
    z = mu + sigma * eps
    xd = img_dec.reshape(img_dec.shape[0], -1)
    h1 = jnp.maximum(xd @ p["dec_w1x"] + z @ p["dec_w1z"] + p["dec_b1"], 0.0)
    h2 = jnp.maximum(h1 @ p["dec_w2"] + p["dec_b2"], 0.0)
    ymu = h2 @ p["dec_wmu"] + p["dec_bmu"]
    ysig = 0.1 + 0.9 * jax.nn.softplus(h2 @ p["dec_ws"] + p["dec_bs"])
    return ymu, ysig, mu, sigma


def make_params(key, in_dim, enc_hidden, r_dim, z_dim, h_dim, y_dim=1):
    ks = jax.random.split(key, 20)

    def w(k, shape, scale=0.05, bf16_round=True):
        v = jax.random.normal(k, shape, jnp.float32) * scale
        if bf16_round:  # weight matrices live in HBM as bf16 -> round once here
            v = v.astype(jnp.bfloat16).astype(jnp.float32)
        return v

    return {
        # encoder first layer split: image part + label row (one [in_dim+1, H] matrix)
        "enc_w1_img": w(ks[0], (in_dim, enc_hidden)),
        "enc_w1_lbl": w(ks[1], (1, enc_hidden), bf16_round=False),   # stays f32 (VPU path)
        "enc_b1": w(ks[2], (1, enc_hidden), 0.01, bf16_round=False),
        "enc_w2": w(ks[3], (enc_hidden, r_dim)),
        "enc_b2": w(ks[4], (1, r_dim), 0.01, bf16_round=False),
        "ne_wh": w(ks[5], (r_dim, r_dim)),
        "ne_bh": w(ks[6], (1, r_dim), 0.01, bf16_round=False),
        "ne_wmu": w(ks[7], (r_dim, z_dim)),
        "ne_bmu": w(ks[8], (1, z_dim), 0.01, bf16_round=False),
        "ne_ws": w(ks[9], (r_dim, z_dim)),
        "ne_bs": w(ks[10], (1, z_dim), 0.01, bf16_round=False),
        "dec_w1x": w(ks[11], (in_dim, h_dim)),
        "dec_w1z": w(ks[12], (z_dim, h_dim)),
        "dec_b1": w(ks[13], (1, h_dim), 0.01, bf16_round=False),
        "dec_w2": w(ks[14], (h_dim, h_dim)),
        "dec_b2": w(ks[15], (1, h_dim), 0.01, bf16_round=False),
        "dec_wmu": w(ks[16], (h_dim, y_dim)),
        "dec_bmu": w(ks[17], (1, y_dim), 0.01, bf16_round=False),
        "dec_ws": w(ks[18], (h_dim, y_dim)),
        "dec_bs": w(ks[19], (1, y_dim), 0.01, bf16_round=False),
    }


if __name__ == "__main__":
    # Small shapes consistent with the module's forward (NCHW images + scalar labels).
    B_c, B_t, C, H, W = 2, 2, 3, 16, 16
    r_dim, h_dim, z_dim, enc_hidden = 32, 32, 16, 64
    in_dim = C * H * W

    key = jax.random.PRNGKey(0)
    k_img_c, k_y_c, k_img_t, k_y_t, k_eps, k_par = jax.random.split(key, 6)

    img_context = jax.random.normal(k_img_c, (B_c, C, H, W), jnp.float32)
    y_context = jax.random.normal(k_y_c, (B_c, 1), jnp.float32)
    img_target = jax.random.normal(k_img_t, (B_t, C, H, W), jnp.float32)
    y_target = jax.random.normal(k_y_t, (B_t, 1), jnp.float32)
    eps = jax.random.normal(k_eps, (1, z_dim), jnp.float32)  # deterministic rsample draw

    params = make_params(k_par, in_dim, enc_hidden, r_dim, z_dim, h_dim)
    packed, dims = pack_params(params)

    # TODO(synk): torch.distributions Normal / kl_divergence have no Pallas equivalent;
    # distributions are returned as (mu, sigma) parameter pairs.
    fwd = jax.jit(functools.partial(neural_process_forward, dims=dims))

    # ---- inference path (y_target=None): z sampled from q_context ----
    y_mu, y_sigma, mu_c, sigma_c = fwd(packed, img_context, y_context, img_target, eps)
    jax.block_until_ready((y_mu, y_sigma, mu_c, sigma_c))
    r_ymu, r_ysig, r_mu, r_sig = ref_forward(params, img_context, y_context, img_target, eps)
    assert jnp.allclose(y_mu, r_ymu, atol=1e-4, rtol=1e-4)
    assert jnp.allclose(y_sigma, r_ysig, atol=1e-4, rtol=1e-4)
    assert jnp.allclose(mu_c, r_mu, atol=1e-4, rtol=1e-4)
    assert jnp.allclose(sigma_c, r_sig, atol=1e-4, rtol=1e-4)

    # ---- training path (y_target given): z sampled from q_target, image passed once ----
    t_ymu, t_ysig, mu_t, sigma_t = fwd(packed, img_context, y_context, img_target, eps,
                                       y_target=y_target)
    jax.block_until_ready((t_ymu, t_ysig, mu_t, sigma_t))
    q_ymu, q_ysig, q_mu, q_sig = ref_forward(params, img_target, y_target, img_target, eps)
    assert jnp.allclose(t_ymu, q_ymu, atol=1e-4, rtol=1e-4)
    assert jnp.allclose(t_ysig, q_ysig, atol=1e-4, rtol=1e-4)
    assert jnp.allclose(mu_t, q_mu, atol=1e-4, rtol=1e-4)
    assert jnp.allclose(sigma_t, q_sig, atol=1e-4, rtol=1e-4)

    print("KERNEL_OK")
</pallas_src>

<mosaic_0001>
module attributes {stable_mosaic.version = 11 : i64} {
  func.func @_np_fused_kernel(%arg0: memref<4x768xf32, #tpu.memory_space<vmem>>, %arg1: memref<2x1xf32, #tpu.memory_space<vmem>>, %arg2: memref<9x128xf32, #tpu.memory_space<vmem>>, %arg3: memref<768x128xbf16, #tpu.memory_space<vmem>>, %arg4: memref<208x128xbf16, #tpu.memory_space<vmem>>, %arg5: memref<3x128xf32, #tpu.memory_space<vmem>>) attributes {dimension_semantics = [], scalar_prefetch = 0 : i64, scratch_operands = 0 : i64, tpu.core_type = #tpu.core_type<tc>} {
    %c0 = arith.constant 0 : index
    %c0_0 = arith.constant 0 : index
    %0 = vector.load %arg2[%c0, %c0_0] : memref<9x128xf32, #tpu.memory_space<vmem>>, vector<1x64xf32>
    %c1 = arith.constant 1 : index
    %c0_1 = arith.constant 0 : index
    %1 = vector.load %arg2[%c1, %c0_1] : memref<9x128xf32, #tpu.memory_space<vmem>>, vector<1x64xf32>
    %c2 = arith.constant 2 : index
    %c0_2 = arith.constant 0 : index
    %2 = vector.load %arg2[%c2, %c0_2] : memref<9x128xf32, #tpu.memory_space<vmem>>, vector<1x32xf32>
    %c3 = arith.constant 3 : index
    %c0_3 = arith.constant 0 : index
    %3 = vector.load %arg2[%c3, %c0_3] : memref<9x128xf32, #tpu.memory_space<vmem>>, vector<1x32xf32>
    %c4 = arith.constant 4 : index
    %c0_4 = arith.constant 0 : index
    %4 = vector.load %arg2[%c4, %c0_4] : memref<9x128xf32, #tpu.memory_space<vmem>>, vector<1x128xf32>
    %c5 = arith.constant 5 : index
    %c0_5 = arith.constant 0 : index
    %5 = vector.load %arg2[%c5, %c0_5] : memref<9x128xf32, #tpu.memory_space<vmem>>, vector<1x32xf32>
    %c6 = arith.constant 6 : index
    %c0_6 = arith.constant 0 : index
    %6 = vector.load %arg2[%c6, %c0_6] : memref<9x128xf32, #tpu.memory_space<vmem>>, vector<1x32xf32>
    %c7 = arith.constant 7 : index
    %c0_7 = arith.constant 0 : index
    %7 = vector.load %arg2[%c7, %c0_7] : memref<9x128xf32, #tpu.memory_space<vmem>>, vector<1x128xf32>
    %c8 = arith.constant 8 : index
    %c0_8 = arith.constant 0 : index
    %8 = vector.load %arg2[%c8, %c0_8] : memref<9x128xf32, #tpu.memory_space<vmem>>, vector<1x16xf32>
    %c0_9 = arith.constant 0 : index
    %c0_10 = arith.constant 0 : index
    %9 = vector.load %arg3[%c0_9, %c0_10] : memref<768x128xbf16, #tpu.memory_space<vmem>>, vector<768x128xbf16>
    %10 = arith.extf %9 : vector<768x128xbf16> to vector<768x128xf32>
    %c0_11 = arith.constant 0 : index
    %c0_12 = arith.constant 0 : index
    %11 = vector.load %arg0[%c0_11, %c0_12] : memref<4x768xf32, #tpu.memory_space<vmem>>, vector<4x768xf32>
    %cst = arith.constant dense<0.000000e+00> : vector<4x128xf32>
    %12 = tpu.matmul %11, %10, %cst {dimension_numbers = #tpu.dot_dimension_numbers<[1], [0], [0], [1], [0, 0, 1, 1], [], []>} : vector<4x768xf32>, vector<768x128xf32>, vector<4x128xf32> -> vector<4x128xf32>
    %13 = vector.extract_strided_slice %12 {offsets = [0, 0], sizes = [2, 64], strides = [1, 1]} : vector<4x128xf32> to vector<2x64xf32>
    %14 = vector.extract_strided_slice %12 {offsets = [2, 64], sizes = [2, 32], strides = [1, 1]} : vector<4x128xf32> to vector<2x32xf32>
    %c0_13 = arith.constant 0 : index
    %c0_14 = arith.constant 0 : index
    %15 = vector.load %arg1[%c0_13, %c0_14] : memref<2x1xf32, #tpu.memory_space<vmem>>, vector<2x1xf32>
    %16 = vector.broadcast %15 : vector<2x1xf32> to vector<2x64xf32>
    %17 = vector.broadcast %1 : vector<1x64xf32> to vector<2x64xf32>
    %18 = arith.mulf %16, %17 : vector<2x64xf32>
    %19 = arith.addf %13, %18 : vector<2x64xf32>
    %20 = vector.broadcast %0 : vector<1x64xf32> to vector<2x64xf32>
    %21 = arith.addf %19, %20 : vector<2x64xf32>
    %cst_15 = arith.constant 0.000000e+00 : f32
    %22 = vector.broadcast %cst_15 : f32 to vector<2x64xf32>
    %23 = arith.maximumf %21, %22 : vector<2x64xf32>
    %c0_16 = arith.constant 0 : index
    %c0_17 = arith.constant 0 : index
    %24 = vector.load %arg4[%c0_16, %c0_17] : memref<208x128xbf16, #tpu.memory_space<vmem>>, vector<64x32xbf16>
    %25 = arith.extf %24 : vector<64x32xbf16> to vector<64x32xf32>
    %cst_18 = arith.constant dense<0.000000e+00> : vector<2x32xf32>
    %26 = tpu.matmul %23, %25, %cst_18 {dimension_numbers = #tpu.dot_dimension_numbers<[1], [0], [0], [1], [0, 0, 1, 1], [], []>} : vector<2x64xf32>, vector<64x32xf32>, vector<2x32xf32> -> vector<2x32xf32>
    %27 = vector.broadcast %2 : vector<1x32xf32> to vector<2x32xf32>
    %28 = arith.addf %26, %27 : vector<2x32xf32>
    %cst_19 = arith.constant dense<0.000000e+00> : vector<32xf32>
    %29 = vector.multi_reduction <add>, %28, %cst_19 [0] : vector<2x32xf32> to vector<32xf32>
    %30 = vector.shape_cast %29 : vector<32xf32> to vector<1x32xf32>
    %cst_20 = arith.constant 2.000000e+00 : f32
    %31 = vector.broadcast %cst_20 : f32 to vector<1x32xf32>
    %32 = arith.divf %30, %31 : vector<1x32xf32>
    %c64 = arith.constant 64 : index
    %c0_21 = arith.constant 0 : index
    %33 = vector.load %arg4[%c64, %c0_21] : memref<208x128xbf16, #tpu.memory_space<vmem>>, vector<32x32xbf16>
    %34 = arith.extf %33 : vector<32x32xbf16> to vector<32x32xf32>
    %cst_22 = arith.constant dense<0.000000e+00> : vector<1x32xf32>
    %35 = tpu.matmul %32, %34, %cst_22 {dimension_numbers = #tpu.dot_dimension_numbers<[1], [0], [0], [1], [0, 0, 1, 1], [], []>} : vector<1x32xf32>, vector<32x32xf32>, vector<1x32xf32> -> vector<1x32xf32>
    %36 = arith.addf %35, %3 : vector<1x32xf32>
    %cst_23 = arith.constant 0.000000e+00 : f32
    %37 = vector.broadcast %cst_23 : f32 to vector<1x32xf32>
    %38 = arith.maximumf %36, %37 : vector<1x32xf32>
    %c96 = arith.constant 96 : index
    %c0_24 = arith.constant 0 : index
    %39 = vector.load %arg4[%c96, %c0_24] : memref<208x128xbf16, #tpu.memory_space<vmem>>, vector<32x128xbf16>
    %40 = arith.extf %39 : vector<32x128xbf16> to vector<32x128xf32>
    %cst_25 = arith.constant dense<0.000000e+00> : vector<1x128xf32>
    %41 = tpu.matmul %38, %40, %cst_25 {dimension_numbers = #tpu.dot_dimension_numbers<[1], [0], [0], [1], [0, 0, 1, 1], [], []>} : vector<1x32xf32>, vector<32x128xf32>, vector<1x128xf32> -> vector<1x128xf32>
    %42 = arith.addf %41, %4 : vector<1x128xf32>
    %43 = arith.negf %42 : vector<1x128xf32>
    %44 = math.exp %43 : vector<1x128xf32>
    %cst_26 = arith.constant 1.000000e+00 : f32
    %45 = vector.broadcast %cst_26 : f32 to vector<1x128xf32>
    %46 = arith.addf %45, %44 : vector<1x128xf32>
    %47 = arith.divf %45, %46 : vector<1x128xf32>
    %cst_27 = arith.constant 0.899999976 : f32
    %48 = vector.broadcast %cst_27 : f32 to vector<1x128xf32>
    %49 = arith.mulf %48, %47 : vector<1x128xf32>
    %cst_28 = arith.constant 1.000000e-01 : f32
    %50 = vector.broadcast %cst_28 : f32 to vector<1x128xf32>
    %51 = arith.addf %50, %49 : vector<1x128xf32>
    %52 = tpu.iota {dimensions = array<i32: 1>} : vector<1x128xi32>
    %c16_i32 = arith.constant 16 : i32
    %53 = vector.broadcast %c16_i32 : i32 to vector<1x128xi32>
    %54 = arith.cmpi sge, %52, %53 : vector<1x128xi32>
    %c32_i32 = arith.constant 32 : i32
    %55 = vector.broadcast %c32_i32 : i32 to vector<1x128xi32>
    %56 = arith.cmpi slt, %52, %55 : vector<1x128xi32>
    %57 = arith.andi %54, %56 : vector<1x128xi1>
    %58 = arith.select %57, %51, %42 : vector<1x128xi1>, vector<1x128xf32>
    %c0_29 = arith.constant 0 : index
    %c0_30 = arith.constant 0 : index
    %59 = vector.load %arg5[%c0_29, %c0_30] : memref<3x128xf32, #tpu.memory_space<vmem>>, vector<1x128xf32>
    tpu.vector_store %arg5[%c0_29, %c0_30], %58 {strides = array<i32>} : memref<3x128xf32, #tpu.memory_space<vmem>>, vector<1x128xf32>,
    %60 = vector.extract_strided_slice %42 {offsets = [0, 0], sizes = [1, 16], strides = [1, 1]} : vector<1x128xf32> to vector<1x16xf32>
    %61 = vector.extract_strided_slice %51 {offsets = [0, 16], sizes = [1, 16], strides = [1, 1]} : vector<1x128xf32> to vector<1x16xf32>
    %62 = arith.mulf %61, %8 : vector<1x16xf32>
    %63 = arith.addf %60, %62 : vector<1x16xf32>
    %c128 = arith.constant 128 : index
    %c0_31 = arith.constant 0 : index
    %64 = vector.load %arg4[%c128, %c0_31] : memref<208x128xbf16, #tpu.memory_space<vmem>>, vector<16x32xbf16>
    %65 = arith.extf %64 : vector<16x32xbf16> to vector<16x32xf32>
    %cst_32 = arith.constant dense<0.000000e+00> : vector<1x32xf32>
    %66 = tpu.matmul %63, %65, %cst_32 {dimension_numbers = #tpu.dot_dimension_numbers<[1], [0], [0], [1], [0, 0, 1, 1], [], []>} : vector<1x16xf32>, vector<16x32xf32>, vector<1x32xf32> -> vector<1x32xf32>
    %67 = arith.addf %66, %5 : vector<1x32xf32>
    %68 = vector.broadcast %67 : vector<1x32xf32> to vector<2x32xf32>
    %69 = arith.addf %14, %68 : vector<2x32xf32>
    %cst_33 = arith.constant 0.000000e+00 : f32
    %70 = vector.broadcast %cst_33 : f32 to vector<2x32xf32>
    %71 = arith.maximumf %69, %70 : vector<2x32xf32>
    %c144 = arith.constant 144 : index
    %c0_34 = arith.constant 0 : index
    %72 = vector.load %arg4[%c144, %c0_34] : memref<208x128xbf16, #tpu.memory_space<vmem>>, vector<32x32xbf16>
    %73 = arith.extf %72 : vector<32x32xbf16> to vector<32x32xf32>
    %cst_35 = arith.constant dense<0.000000e+00> : vector<2x32xf32>
    %74 = tpu.matmul %71, %73, %cst_35 {dimension_numbers = #tpu.dot_dimension_numbers<[1], [0], [0], [1], [0, 0, 1, 1], [], []>} : vector<2x32xf32>, vector<32x32xf32>, vector<2x32xf32> -> vector<2x32xf32>
    %75 = vector.broadcast %6 : vector<1x32xf32> to vector<2x32xf32>
    %76 = arith.addf %74, %75 : vector<2x32xf32>
    %cst_36 = arith.constant 0.000000e+00 : f32
    %77 = vector.broadcast %cst_36 : f32 to vector<2x32xf32>
    %78 = arith.maximumf %76, %77 : vector<2x32xf32>
    %c176 = arith.constant 176 : index
    %c0_37 = arith.constant 0 : index
    %79 = vector.load %arg4[%c176, %c0_37] : memref<208x128xbf16, #tpu.memory_space<vmem>>, vector<32x128xbf16>
    %80 = arith.extf %79 : vector<32x128xbf16> to vector<32x128xf32>
    %cst_38 = arith.constant dense<0.000000e+00> : vector<2x128xf32>
    %81 = tpu.matmul %78, %80, %cst_38 {dimension_numbers = #tpu.dot_dimension_numbers<[1], [0], [0], [1], [0, 0, 1, 1], [], []>} : vector<2x32xf32>, vector<32x128xf32>, vector<2x128xf32> -> vector<2x128xf32>
    %82 = vector.broadcast %7 : vector<1x128xf32> to vector<2x128xf32>
    %83 = arith.addf %81, %82 : vector<2x128xf32>
    %cst_39 = arith.constant 0.000000e+00 : f32
    %84 = vector.broadcast %cst_39 : f32 to vector<2x128xf32>
    %85 = arith.maximumf %83, %84 : vector<2x128xf32>
    %86 = vector.broadcast %cst_39 : f32 to vector<2x128xf32>
    %87 = arith.subf %83, %86 : vector<2x128xf32>
    %88 = arith.cmpf one, %87, %87 : vector<2x128xf32>
    %89 = vector.broadcast %cst_39 : f32 to vector<2x128xf32>
    %90 = arith.addf %83, %89 : vector<2x128xf32>
    %91 = math.absf %87 : vector<2x128xf32>
    %cst_40 = arith.constant 0.000000e+00 : f32
    %92 = vector.broadcast %cst_40 : f32 to vector<2x128xf32>
    %93 = arith.subf %92, %91 : vector<2x128xf32>
    %94 = math.exp %93 : vector<2x128xf32>
    %95 = math.log1p %94 : vector<2x128xf32>
    %96 = arith.addf %85, %95 : vector<2x128xf32>
    %97 = arith.select %88, %90, %96 : vector<2x128xi1>, vector<2x128xf32>
    %cst_41 = arith.constant 0.899999976 : f32
    %98 = vector.broadcast %cst_41 : f32 to vector<2x128xf32>
    %99 = arith.mulf %98, %97 : vector<2x128xf32>
    %cst_42 = arith.constant 1.000000e-01 : f32
    %100 = vector.broadcast %cst_42 : f32 to vector<2x128xf32>
    %101 = arith.addf %100, %99 : vector<2x128xf32>
    %102 = tpu.iota {dimensions = array<i32: 1>} : vector<2x128xi32>
    %c1_i32 = arith.constant 1 : i32
    %103 = vector.broadcast %c1_i32 : i32 to vector<2x128xi32>
    %104 = arith.cmpi sge, %102, %103 : vector<2x128xi32>
    %c2_i32 = arith.constant 2 : i32
    %105 = vector.broadcast %c2_i32 : i32 to vector<2x128xi32>
    %106 = arith.cmpi slt, %102, %105 : vector<2x128xi32>
    %107 = arith.andi %104, %106 : vector<2x128xi1>
    %108 = arith.select %107, %101, %83 : vector<2x128xi1>, vector<2x128xf32>
    %c1_43 = arith.constant 1 : index
    %c0_44 = arith.constant 0 : index
    %109 = vector.load %arg5[%c1_43, %c0_44] : memref<3x128xf32, #tpu.memory_space<vmem>>, vector<2x128xf32>
    tpu.vector_store %arg5[%c1_43, %c0_44], %108 {strides = array<i32>} : memref<3x128xf32, #tpu.memory_space<vmem>>, vector<2x128xf32>,
    return
  }
}

</mosaic_0001>

<llo_original>
// kernel: neural_process_forward.1
$region0: #{neural_process_forward.1}
  #allocation0 [shape = 'u32[]', space=smem, size = 0x4, offset = 0x4, fixed_abs, tag = 'smem constant byte address 0x4 - core index']
  #allocation1 [shape = 'u32[144,128]{1,0:T(1,128)}', space=vmem, size = 0x12000, scoped, tag = 'internal scratch']
  %s0 = inlined_call_operand.vmem [shape: f32[4,768], index: 0, kind: input, shape index: {}]
  %s1 = inlined_call_operand.vmem [shape: f32[2,1], index: 1, kind: input, shape index: {}]
  %s2 = inlined_call_operand.vmem [shape: f32[9,128], index: 2, kind: input, shape index: {}]
  %s3 = inlined_call_operand.hbm [shape: bf16[768,128], index: 3, kind: input, shape index: {}]
  %s4 = inlined_call_operand.vmem [shape: bf16[208,128], index: 4, kind: input, shape index: {}]
  %s5 = inlined_call_operand.vmem [shape: f32[3,128], index: 5, kind: output, shape index: {}]
  %s6 = sld [smem:[#allocation0]]
  $region34: #{neural_process_forward.1} parent=0
    _
  %s8 = ssub.s32 1, %s6
  %s9 = scalar_select 0, %s8, %s6
  $region1: #{neural_process_forward.1} parent=0
    #allocation2 [shape = 'u8[196608]{0}', space=vmem, size = 0x30000, scoped, tag = 'input window, operand 3, single buffered']
    #allocation3 [shape = 's32[1]{0}', space=sflag, size = 0x4, scoped, tag = 'scoped memory for neural_process_forward.1']
    %10 = vsyncpa [#allocation3], 0
    // Predicated region
    $region2: #{neural_process_forward.1} parent=1 // pred_check
      _
    $region3: #{neural_process_forward.1} parent=1 // pred_check_branch
      %12 = sbr.rel (0) target = $region5
    $region4: #{neural_process_forward.1} parent=1 // pred_region
      _
    $region5: #{neural_process_forward.1} parent=1 // pred_fallthru
      _
    // Predicated region
    $region6: #{neural_process_forward.1} parent=1 // pred_check
      _
    $region7: #{neural_process_forward.1} parent=1 // pred_check_branch
      %14 = sbr.rel (0) target = $region9
    $region8: #{neural_process_forward.1} parent=1 // pred_region
      _
    $region9: #{neural_process_forward.1} parent=1 // pred_fallthru
      _
    // Predicated region
    $region10: #{neural_process_forward.1} parent=1 // pred_check
      _
    $region11: #{neural_process_forward.1} parent=1 // pred_check_branch
      %16 = sbr.rel (0) target = $region13
    $region12: #{neural_process_forward.1} parent=1 // pred_region
      _
    $region13: #{neural_process_forward.1} parent=1 // pred_fallthru
      _
    // Predicated region
    $region14: #{neural_process_forward.1} parent=1 // pred_check
      _
    $region15: #{neural_process_forward.1} parent=1 // pred_check_branch
      %18 = sbr.rel (0) target = $region17
    $region16: #{neural_process_forward.1} parent=1 // pred_region
      %s20 = ssub.s32 6144, 6144
      %21 = vsyncadd [#allocation3], %s20
      %s22 = sshll.u32 [#allocation2], 4
      %s23 = int_to_ptr.vmem [resolvable:$true] %s22
      %28 = dma.hbm_to_vmem [thread:$0]  %s3, 6144, %s23, [#allocation3], 64, 64, 4
    $region17: #{neural_process_forward.1} parent=1 // pred_fallthru
      _
    // Predicated region
    $region18: #{neural_process_forward.1} parent=1 // pred_check
      _
    $region19: #{neural_process_forward.1} parent=1 // pred_check_branch
      %30 = sbr.rel (0) target = $region21
    $region20: #{neural_process_forward.1} parent=1 // pred_region
      _
    $region21: #{neural_process_forward.1} parent=1 // pred_fallthru
      _
    // Predicated region
    $region22: #{neural_process_forward.1} parent=1 // pred_check
      _
    $region23: #{neural_process_forward.1} parent=1 // pred_check_branch
      %32 = sbr.rel (0) target = $region25
    $region24: #{neural_process_forward.1} parent=1 // pred_region
      %33 = dma.done [#allocation3], 6144
    $region25: #{neural_process_forward.1} parent=1 // pred_fallthru
      _
    %v34 = vld [vmem:[%s2] sm:$0x1]
    %v35 = vld [vmem:[%s2 + $0x1] sm:$0x1]
    %v36 = vld [vmem:[%s2 + $0x2] sm:$0x1]
    %v37 = vld [vmem:[%s2 + $0x3] sm:$0x1]
    %v38 = vld [vmem:[%s2 + $0x4] sm:$0x1]
    %v39 = vld [vmem:[%s2 + $0x5] sm:$0x1]
    %v40 = vld [vmem:[%s2 + $0x6] sm:$0x1]
    %v41 = vld [vmem:[%s2 + $0x7] sm:$0x1]
    %v42 = vld [vmem:[%s2 + $0x8] sm:$0x1]
    %v43 = vld [vmem:[#allocation2] sm:$0xf]
    %v44 = vld [vmem:[#allocation2 + $0x4] sm:$0xf]
    %v45 = vld [vmem:[#allocation2 + $0x8] sm:$0xf]
    %v46 = vld [vmem:[#allocation2 + $0xc] sm:$0xf]
    %v47 = vld [vmem:[#allocation2 + $0x10] sm:$0xf]
    %v48 = vld [vmem:[#allocation2 + $0x14] sm:$0xf]
    %v49 = vld [vmem:[#allocation2 + $0x18] sm:$0xf]
    %v50 = vld [vmem:[#allocation2 + $0x1c] sm:$0xf]
    %v51 = vld [vmem:[#allocation2 + $0x20] sm:$0xf]
    %v52 = vld [vmem:[#allocation2 + $0x24] sm:$0xf]
    %v53 = vld [vmem:[#allocation2 + $0x28] sm:$0xf]
    %v54 = vld [vmem:[#allocation2 + $0x2c] sm:$0xf]
    %v55 = vld [vmem:[#allocation2 + $0x30] sm:$0xf]
    %v56 = vld [vmem:[#allocation2 + $0x34] sm:$0xf]
    %v57 = vld [vmem:[#allocation2 + $0x38] sm:$0xf]
    %v58 = vld [vmem:[#allocation2 + $0x3c] sm:$0xf]
    %v59 = vld [vmem:[#allocation2 + $0x40] sm:$0xf]
    %v60 = vld [vmem:[#allocation2 + $0x44] sm:$0xf]
    %v61 = vld [vmem:[#allocation2 + $0x48] sm:$0xf]
    %v62 = vld [vmem:[#allocation2 + $0x4c] sm:$0xf]
    %v63 = vld [vmem:[#allocation2 + $0x50] sm:$0xf]
    %v64 = vld [vmem:[#allocation2 + $0x54] sm:$0xf]
    %v65 = vld [vmem:[#allocation2 + $0x58] sm:$0xf]
    %v66 = vld [vmem:[#allocation2 + $0x5c] sm:$0xf]
    %v67 = vld [vmem:[#allocation2 + $0x60] sm:$0xf]
    %v68 = vld [vmem:[#allocation2 + $0x64] sm:$0xf]
    %v69 = vld [vmem:[#allocation2 + $0x68] sm:$0xf]
    %v70 = vld [vmem:[#allocation2 + $0x6c] sm:$0xf]
    %v71 = vld [vmem:[#allocation2 + $0x70] sm:$0xf]
    %v72 = vld [vmem:[#allocation2 + $0x74] sm:$0xf]
    %v73 = vld [vmem:[#allocation2 + $0x78] sm:$0xf]
    %v74 = vld [vmem:[#allocation2 + $0x7c] sm:$0xf]
    %v75 = vld [vmem:[#allocation2 + $0x80] sm:$0xf]
    %v76 = vld [vmem:[#allocation2 + $0x84] sm:$0xf]
    %v77 = vld [vmem:[#allocation2 + $0x88] sm:$0xf]
    %v78 = vld [vmem:[#allocation2 + $0x8c] sm:$0xf]
    %v79 = vld [vmem:[#allocation2 + $0x90] sm:$0xf]
    %v80 = vld [vmem:[#allocation2 + $0x94] sm:$0xf]
    %v81 = vld [vmem:[#allocation2 + $0x98] sm:$0xf]
    %v82 = vld [vmem:[#allocation2 + $0x9c] sm:$0xf]
    %v83 = vld [vmem:[#allocation2 + $0xa0] sm:$0xf]
    %v84 = vld [vmem:[#allocation2 + $0xa4] sm:$0xf]
    %v85 = vld [vmem:[#allocation2 + $0xa8] sm:$0xf]
    %v86 = vld [vmem:[#allocation2 + $0xac] sm:$0xf]
    %v87 = vld [vmem:[#allocation2 + $0xb0] sm:$0xf]
    %v88 = vld [vmem:[#allocation2 + $0xb4] sm:$0xf]
    %v89 = vld [vmem:[#allocation2 + $0xb8] sm:$0xf]
    %v90 = vld [vmem:[#allocation2 + $0xbc] sm:$0xf]
    %v91 = vld [vmem:[#allocation2 + $0xc0] sm:$0xf]
    %v92 = vld [vmem:[#allocation2 + $0xc4] sm:$0xf]
    %v93 = vld [vmem:[#allocation2 + $0xc8] sm:$0xf]
    %v94 = vld [vmem:[#allocation2 + $0xcc] sm:$0xf]
    %v95 = vld [vmem:[#allocation2 + $0xd0] sm:$0xf]
    %v96 = vld [vmem:[#allocation2 + $0xd4] sm:$0xf]
    %v97 = vld [vmem:[#allocation2 + $0xd8] sm:$0xf]
    %v98 = vld [vmem:[#allocation2 + $0xdc] sm:$0xf]
    %v99 = vld [vmem:[#allocation2 + $0xe0] sm:$0xf]
    %v100 = vld [vmem:[#allocation2 + $0xe4] sm:$0xf]
    %v101 = vld [vmem:[#allocation2 + $0xe8] sm:$0xf]
    %v102 = vld [vmem:[#allocation2 + $0xec] sm:$0xf]
    %v103 = vld [vmem:[#allocation2 + $0xf0] sm:$0xf]
    %v104 = vld [vmem:[#allocation2 + $0xf4] sm:$0xf]
    %v105 = vld [vmem:[#allocation2 + $0xf8] sm:$0xf]
    %v106 = vld [vmem:[#allocation2 + $0xfc] sm:$0xf]
    %v107 = vld [vmem:[#allocation2 + $0x100] sm:$0xf]
    %v108 = vld [vmem:[#allocation2 + $0x104] sm:$0xf]
    %v109 = vld [vmem:[#allocation2 + $0x108] sm:$0xf]
    %v110 = vld [vmem:[#allocation2 + $0x10c] sm:$0xf]
    %v111 = vld [vmem:[#allocation2 + $0x110] sm:$0xf]
    %v112 = vld [vmem:[#allocation2 + $0x114] sm:$0xf]
    %v113 = vld [vmem:[#allocation2 + $0x118] sm:$0xf]
    %v114 = vld [vmem:[#allocation2 + $0x11c] sm:$0xf]
    %v115 = vld [vmem:[#allocation2 + $0x120] sm:$0xf]
    %v116 = vld [vmem:[#allocation2 + $0x124] sm:$0xf]
    %v117 = vld [vmem:[#allocation2 + $0x128] sm:$0xf]
    %v118 = vld [vmem:[#allocation2 + $0x12c] sm:$0xf]
    %v119 = vld [vmem:[#allocation2 + $0x130] sm:$0xf]
    %v120 = vld [vmem:[#allocation2 + $0x134] sm:$0xf]
    %v121 = vld [vmem:[#allocation2 + $0x138] sm:$0xf]
    %v122 = vld [vmem:[#allocation2 + $0x13c] sm:$0xf]
    %v123 = vld [vmem:[#allocation2 + $0x140] sm:$0xf]
    %v124 = vld [vmem:[#allocation2 + $0x144] sm:$0xf]
    %v125 = vld [vmem:[#allocation2 + $0x148] sm:$0xf]
    %v126 = vld [vmem:[#allocation2 + $0x14c] sm:$0xf]
    %v127 = vld [vmem:[#allocation2 + $0x150] sm:$0xf]
    %v128 = vld [vmem:[#allocation2 + $0x154] sm:$0xf]
    %v129 = vld [vmem:[#allocation2 + $0x158] sm:$0xf]
    %v130 = vld [vmem:[#allocation2 + $0x15c] sm:$0xf]
    %v131 = vld [vmem:[#allocation2 + $0x160] sm:$0xf]
    %v132 = vld [vmem:[#allocation2 + $0x164] sm:$0xf]
    %v133 = vld [vmem:[#allocation2 + $0x168] sm:$0xf]
    %v134 = vld [vmem:[#allocation2 + $0x16c] sm:$0xf]
    %v135 = vld [vmem:[#allocation2 + $0x170] sm:$0xf]
    %v136 = vld [vmem:[#allocation2 + $0x174] sm:$0xf]
    %v137 = vld [vmem:[#allocation2 + $0x178] sm:$0xf]
    %v138 = vld [vmem:[#allocation2 + $0x17c] sm:$0xf]
    %v139 = vunpack.c.l.bf16 %v43
    %v140 = vunpack.c.l.bf16 %v44
    %v141 = vunpack.c.l.bf16 %v45
    %v142 = vunpack.c.l.bf16 %v46
    %v143 = vunpack.c.l.bf16 %v47
    %v144 = vunpack.c.l.bf16 %v48
    %v145 = vunpack.c.l.bf16 %v49
    %v146 = vunpack.c.l.bf16 %v50
    %v147 = vunpack.c.l.bf16 %v51
    %v148 = vunpack.c.l.bf16 %v52
    %v149 = vunpack.c.l.bf16 %v53
    %v150 = vunpack.c.l.bf16 %v54
    %v151 = vunpack.c.l.bf16 %v55
    %v152 = vunpack.c.l.bf16 %v56
    %v153 = vunpack.c.l.bf16 %v57
    %v154 = vunpack.c.l.bf16 %v58
    %v155 = vunpack.c.l.bf16 %v59
    %v156 = vunpack.c.l.bf16 %v60
    %v157 = vunpack.c.l.bf16 %v61
    %v158 = vunpack.c.l.bf16 %v62
    %v159 = vunpack.c.l.bf16 %v63
    %v160 = vunpack.c.l.bf16 %v64
    %v161 = vunpack.c.l.bf16 %v65
    %v162 = vunpack.c.l.bf16 %v66
    %v163 = vunpack.c.l.bf16 %v67
    %v164 = vunpack.c.l.bf16 %v68
    %v165 = vunpack.c.l.bf16 %v69
    %v166 = vunpack.c.l.bf16 %v70
    %v167 = vunpack.c.l.bf16 %v71
    %v168 = vunpack.c.l.bf16 %v72
    %v169 = vunpack.c.l.bf16 %v73
    %v170 = vunpack.c.l.bf16 %v74
    %v171 = vunpack.c.l.bf16 %v75
    %v172 = vunpack.c.l.bf16 %v76
    %v173 = vunpack.c.l.bf16 %v77
    %v174 = vunpack.c.l.bf16 %v78
    %v175 = vunpack.c.l.bf16 %v79
    %v176 = vunpack.c.l.bf16 %v80
    %v177 = vunpack.c.l.bf16 %v81
    %v178 = vunpack.c.l.bf16 %v82
    %v179 = vunpack.c.l.bf16 %v83
    %v180 = vunpack.c.l.bf16 %v84
    %v181 = vunpack.c.l.bf16 %v85
    %v182 = vunpack.c.l.bf16 %v86
    %v183 = vunpack.c.l.bf16 %v87
    %v184 = vunpack.c.l.bf16 %v88
    %v185 = vunpack.c.l.bf16 %v89
    %v186 = vunpack.c.l.bf16 %v90
    %v187 = vunpack.c.l.bf16 %v91
    %v188 = vunpack.c.l.bf16 %v92
    %v189 = vunpack.c.l.bf16 %v93
    %v190 = vunpack.c.l.bf16 %v94
    %v191 = vunpack.c.l.bf16 %v95
    %v192 = vunpack.c.l.bf16 %v96
    %v193 = vunpack.c.l.bf16 %v97
    %v194 = vunpack.c.l.bf16 %v98
    %v195 = vunpack.c.l.bf16 %v99
    %v196 = vunpack.c.l.bf16 %v100
    %v197 = vunpack.c.l.bf16 %v101
    %v198 = vunpack.c.l.bf16 %v102
    %v199 = vunpack.c.l.bf16 %v103
    %v200 = vunpack.c.l.bf16 %v104
    %v201 = vunpack.c.l.bf16 %v105
    %v202 = vunpack.c.l.bf16 %v106
    %v203 = vunpack.c.l.bf16 %v107
    %v204 = vunpack.c.l.bf16 %v108
    %v205 = vunpack.c.l.bf16 %v109
    %v206 = vunpack.c.l.bf16 %v110
    %v207 = vunpack.c.l.bf16 %v111
    %v208 = vunpack.c.l.bf16 %v112
    %v209 = vunpack.c.l.bf16 %v113
    %v210 = vunpack.c.l.bf16 %v114
    %v211 = vunpack.c.l.bf16 %v115
    %v212 = vunpack.c.l.bf16 %v116
    %v213 = vunpack.c.l.bf16 %v117
    %v214 = vunpack.c.l.bf16 %v118
    %v215 = vunpack.c.l.bf16 %v119
    %v216 = vunpack.c.l.bf16 %v120
    %v217 = vunpack.c.l.bf16 %v121
    %v218 = vunpack.c.l.bf16 %v122
    %v219 = vunpack.c.l.bf16 %v123
    %v220 = vunpack.c.l.bf16 %v124
    %v221 = vunpack.c.l.bf16 %v125
    %v222 = vunpack.c.l.bf16 %v126
    %v223 = vunpack.c.l.bf16 %v127
    %v224 = vunpack.c.l.bf16 %v128
    %v225 = vunpack.c.l.bf16 %v129
    %v226 = vunpack.c.l.bf16 %v130
    %v227 = vunpack.c.l.bf16 %v131
    %v228 = vunpack.c.l.bf16 %v132
    %v229 = vunpack.c.l.bf16 %v133
    %v230 = vunpack.c.l.bf16 %v134
    %v231 = vunpack.c.l.bf16 %v135
    %v232 = vunpack.c.l.bf16 %v136
    %v233 = vunpack.c.l.bf16 %v137
    %v234 = vunpack.c.l.bf16 %v138
    %v235 = vld [vmem:[%s0] sm:$0xff]
    %v236 = vld [vmem:[%s0 + $0x8] sm:$0xff]
    %v237 = vld [vmem:[%s0 + $0x10] sm:$0xff]
    %v241 = vcombine.high %v235, %v235
    %v242 = vcombine.high %v236, %v236
    %v243 = vcombine.high %v237, %v237
    %247 = vmatprep.subr.mxu0 0.0
    %248 = vmatpush1.msra.mxu0 %v139
    %249 = vmatprep.subr.mxu0 0.0
    %250 = vmatpush1.msra.mxu0 %v140
    %251 = vmatprep.subr.mxu0 0.0
    %252 = vmatpush1.msra.mxu0 %v141
    %253 = vmatprep.subr.mxu0 0.0
    %254 = vmatpush1.msra.mxu0 %v142
    %255 = vmatprep.subr.mxu0 0.0
    %256 = vmatpush1.msra.mxu0 %v143
    %257 = vmatprep.subr.mxu0 0.0
    %258 = vmatpush1.msra.mxu0 %v144
    %259 = vmatprep.subr.mxu0 0.0
    %260 = vmatpush1.msra.mxu0 %v145
    %261 = vmatprep.subr.mxu0 0.0
    %262 = vmatpush1.msra.mxu0 %v146
    %263 = vmatprep.subr.mxu0 0.0
    %264 = vmatpush1.msra.mxu0 %v147
    %265 = vmatprep.subr.mxu0 0.0
    %266 = vmatpush1.msra.mxu0 %v148
    %267 = vmatprep.subr.mxu0 0.0
    %268 = vmatpush1.msra.mxu0 %v149
    %269 = vmatprep.subr.mxu0 0.0
    %270 = vmatpush1.msra.mxu0 %v150
    %271 = vmatprep.subr.mxu0 0.0
    %272 = vmatpush1.msra.mxu0 %v151
    %273 = vmatprep.subr.mxu0 0.0
    %274 = vmatpush1.msra.mxu0 %v152
    %275 = vmatprep.subr.mxu0 0.0
    %276 = vmatpush1.msra.mxu0 %v153
    %277 = vmatprep.subr.mxu0 0.0
    %278 = vmatpush1.msra.mxu0 %v154
    %279 = vmatprep.subr.mxu0 0.0
    %280 = vmatpush1.msra.mxu0 %v155
    %281 = vmatprep.subr.mxu0 0.0
    %282 = vmatpush1.msra.mxu0 %v156
    %283 = vmatprep.subr.mxu0 0.0
    %284 = vmatpush1.msra.mxu0 %v157
    %285 = vmatprep.subr.mxu0 0.0
    %286 = vmatpush1.msra.mxu0 %v158
    %287 = vmatprep.subr.mxu0 0.0
    %288 = vmatpush1.msra.mxu0 %v159
    %289 = vmatprep.subr.mxu0 0.0
    %290 = vmatpush1.msra.mxu0 %v160
    %291 = vmatprep.subr.mxu0 0.0
    %292 = vmatpush1.msra.mxu0 %v161
    %293 = vmatprep.subr.mxu0 0.0
    %294 = vmatpush1.msra.mxu0 %v162
    %295 = vmatprep.subr.mxu0 0.0
    %296 = vmatpush1.msra.mxu0 %v163
    %297 = vmatprep.subr.mxu0 0.0
    %298 = vmatpush1.msra.mxu0 %v164
    %299 = vmatprep.subr.mxu0 0.0
    %300 = vmatpush1.msra.mxu0 %v165
    %301 = vmatprep.subr.mxu0 0.0
    %302 = vmatpush1.msra.mxu0 %v166
    %303 = vmatprep.subr.mxu0 0.0
    %304 = vmatpush1.msra.mxu0 %v167
    %305 = vmatprep.subr.mxu0 0.0
    %306 = vmatpush1.msra.mxu0 %v168
    %307 = vmatprep.subr.mxu0 0.0
    %308 = vmatpush1.msra.mxu0 %v169
    %309 = vmatprep.subr.mxu0 0.0
    %310 = vmatpush1.msra.mxu0 %v170
    %311 = vmatprep.mubr.f32.mxu0 %v241
    %312 = vmatmul.mubr.f32.gmra.mrb[0].mxu0 %v235
    %v313 = vpop.f32.mrb[0].mxu0
    %v314 = vadd.f32 0.0, %v313
    %v315 = vpop.f32.mrb[0].mxu0
    %316 = vdwg.mxu0
    %317 = vmatprep.subr.mxu0 0.0
    %318 = vmatpush1.msra.mxu0 %v171
    %319 = vmatprep.subr.mxu0 0.0
    %320 = vmatpush1.msra.mxu0 %v172
    %321 = vmatprep.subr.mxu0 0.0
    %322 = vmatpush1.msra.mxu0 %v173
    %323 = vmatprep.subr.mxu0 0.0
    %324 = vmatpush1.msra.mxu0 %v174
    %325 = vmatprep.subr.mxu0 0.0
    %326 = vmatpush1.msra.mxu0 %v175
    %327 = vmatprep.subr.mxu0 0.0
    %328 = vmatpush1.msra.mxu0 %v176
    %329 = vmatprep.subr.mxu0 0.0
    %330 = vmatpush1.msra.mxu0 %v177
    %331 = vmatprep.subr.mxu0 0.0
    %332 = vmatpush1.msra.mxu0 %v178
    %333 = vmatprep.subr.mxu0 0.0
    %334 = vmatpush1.msra.mxu0 %v179
    %335 = vmatprep.subr.mxu0 0.0
    %336 = vmatpush1.msra.mxu0 %v180
    %337 = vmatprep.subr.mxu0 0.0
    %338 = vmatpush1.msra.mxu0 %v181
    %339 = vmatprep.subr.mxu0 0.0
    %340 = vmatpush1.msra.mxu0 %v182
    %341 = vmatprep.subr.mxu0 0.0
    %342 = vmatpush1.msra.mxu0 %v183
    %343 = vmatprep.subr.mxu0 0.0
    %344 = vmatpush1.msra.mxu0 %v184
    %345 = vmatprep.subr.mxu0 0.0
    %346 = vmatpush1.msra.mxu0 %v185
    %347 = vmatprep.subr.mxu0 0.0
    %348 = vmatpush1.msra.mxu0 %v186
    %349 = vmatprep.subr.mxu0 0.0
    %350 = vmatpush1.msra.mxu0 %v187
    %351 = vmatprep.subr.mxu0 0.0
    %352 = vmatpush1.msra.mxu0 %v188
    %353 = vmatprep.subr.mxu0 0.0
    %354 = vmatpush1.msra.mxu0 %v189
    %355 = vmatprep.subr.mxu0 0.0
    %356 = vmatpush1.msra.mxu0 %v190
    %357 = vmatprep.subr.mxu0 0.0
    %358 = vmatpush1.msra.mxu0 %v191
    %359 = vmatprep.subr.mxu0 0.0
    %360 = vmatpush1.msra.mxu0 %v192
    %361 = vmatprep.subr.mxu0 0.0
    %362 = vmatpush1.msra.mxu0 %v193
    %363 = vmatprep.subr.mxu0 0.0
    %364 = vmatpush1.msra.mxu0 %v194
    %365 = vmatprep.subr.mxu0 0.0
    %366 = vmatpush1.msra.mxu0 %v195
    %367 = vmatprep.subr.mxu0 0.0
    %368 = vmatpush1.msra.mxu0 %v196
    %369 = vmatprep.subr.mxu0 0.0
    %370 = vmatpush1.msra.mxu0 %v197
    %371 = vmatprep.subr.mxu0 0.0
    %372 = vmatpush1.msra.mxu0 %v198
    %373 = vmatprep.subr.mxu0 0.0
    %374 = vmatpush1.msra.mxu0 %v199
    %375 = vmatprep.subr.mxu0 0.0
    %376 = vmatpush1.msra.mxu0 %v200
    %377 = vmatprep.subr.mxu0 0.0
    %378 = vmatpush1.msra.mxu0 %v201
    %379 = vmatprep.subr.mxu0 0.0
    %380 = vmatpush1.msra.mxu0 %v202
    %381 = vmatprep.mubr.f32.mxu0 %v242
    %382 = vmatmul.mubr.f32.gmra.mrb[0].mxu0 %v236
    %v383 = vpop.f32.mrb[0].mxu0
    %v384 = vadd.f32 %v314, %v383
    %v385 = vpop.f32.mrb[0].mxu0
    %386 = vdwg.mxu0
    %387 = vmatprep.subr.mxu0 0.0
    %388 = vmatpush1.msra.mxu0 %v203
    %389 = vmatprep.subr.mxu0 0.0
    %390 = vmatpush1.msra.mxu0 %v204
    %391 = vmatprep.subr.mxu0 0.0
    %392 = vmatpush1.msra.mxu0 %v205
    %393 = vmatprep.subr.mxu0 0.0
    %394 = vmatpush1.msra.mxu0 %v206
    %395 = vmatprep.subr.mxu0 0.0
    %396 = vmatpush1.msra.mxu0 %v207
    %397 = vmatprep.subr.mxu0 0.0
    %398 = vmatpush1.msra.mxu0 %v208
    %399 = vmatprep.subr.mxu0 0.0
    %400 = vmatpush1.msra.mxu0 %v209
    %401 = vmatprep.subr.mxu0 0.0
    %402 = vmatpush1.msra.mxu0 %v210
    %403 = vmatprep.subr.mxu0 0.0
    %404 = vmatpush1.msra.mxu0 %v211
    %405 = vmatprep.subr.mxu0 0.0
    %406 = vmatpush1.msra.mxu0 %v212
    %407 = vmatprep.subr.mxu0 0.0
    %408 = vmatpush1.msra.mxu0 %v213
    %409 = vmatprep.subr.mxu0 0.0
    %410 = vmatpush1.msra.mxu0 %v214
    %411 = vmatprep.subr.mxu0 0.0
    %412 = vmatpush1.msra.mxu0 %v215
    %413 = vmatprep.subr.mxu0 0.0
    %414 = vmatpush1.msra.mxu0 %v216
    %415 = vmatprep.subr.mxu0 0.0
    %416 = vmatpush1.msra.mxu0 %v217
    %417 = vmatprep.subr.mxu0 0.0
    %418 = vmatpush1.msra.mxu0 %v218
    %419 = vmatprep.subr.mxu0 0.0
    %420 = vmatpush1.msra.mxu0 %v219
    %421 = vmatprep.subr.mxu0 0.0
    %422 = vmatpush1.msra.mxu0 %v220
    %423 = vmatprep.subr.mxu0 0.0
    %424 = vmatpush1.msra.mxu0 %v221
    %425 = vmatprep.subr.mxu0 0.0
    %426 = vmatpush1.msra.mxu0 %v222
    %427 = vmatprep.subr.mxu0 0.0
    %428 = vmatpush1.msra.mxu0 %v223
    %429 = vmatprep.subr.mxu0 0.0
    %430 = vmatpush1.msra.mxu0 %v224
    %431 = vmatprep.subr.mxu0 0.0
    %432 = vmatpush1.msra.mxu0 %v225
    %433 = vmatprep.subr.mxu0 0.0
    %434 = vmatpush1.msra.mxu0 %v226
    %435 = vmatprep.subr.mxu0 0.0
    %436 = vmatpush1.msra.mxu0 %v227
    %437 = vmatprep.subr.mxu0 0.0
    %438 = vmatpush1.msra.mxu0 %v228
    %439 = vmatprep.subr.mxu0 0.0
    %440 = vmatpush1.msra.mxu0 %v229
    %441 = vmatprep.subr.mxu0 0.0
    %442 = vmatpush1.msra.mxu0 %v230
    %443 = vmatprep.subr.mxu0 0.0
    %444 = vmatpush1.msra.mxu0 %v231
    %445 = vmatprep.subr.mxu0 0.0
    %446 = vmatpush1.msra.mxu0 %v232
    %447 = vmatprep.subr.mxu0 0.0
    %448 = vmatpush1.msra.mxu0 %v233
    %449 = vmatprep.subr.mxu0 0.0
    %450 = vmatpush1.msra.mxu0 %v234
    %451 = vmatprep.mubr.f32.mxu0 %v243
    %452 = vmatmul.mubr.f32.gmra.mrb[0].mxu0 %v237
    %v453 = vpop.f32.mrb[0].mxu0
    %v454 = vadd.f32 %v384, %v453
    %v455 = vpop.f32.mrb[0].mxu0
    %456 = vdwg.mxu0
    %v457 = vld [vmem:[%s1] sm:$0x3]
    %459 = vset.pattern.permute.xlu0 0
    %460 = vperm.xlu0 %459, %v457
    %v461 = vpop.permute.xlu0 %460
    %v463 = vlaneseq
    %v464 = vshrl.u32 %v463, 7
    %v465 = vsub.s32 0, %v464
    %v466 = vrot.slane %v35, %v465
    %v467 = vmul.f32 %v461, %v466
    %v468 = vadd.f32 %v454, %v467
    %v469 = vlaneseq
    %v470 = vshrl.u32 %v469, 7
    %v471 = vsub.s32 0, %v470
    %v472 = vrot.slane %v34, %v471
    %v473 = vadd.f32 %v468, %v472
    %v474 = vmax.f32 %v473, 0.0
    %v475 = vld [vmem:[%s4] sm:$0xf]
    %v476 = vld [vmem:[%s4 + $0x4] sm:$0xf]
    %v477 = vld [vmem:[%s4 + $0x8] sm:$0xf]
    %v478 = vld [vmem:[%s4 + $0xc] sm:$0xf]
    %v479 = vld [vmem:[%s4 + $0x10] sm:$0xf]
    %v480 = vld [vmem:[%s4 + $0x14] sm:$0xf]
    %v481 = vld [vmem:[%s4 + $0x18] sm:$0xf]
    %v482 = vld [vmem:[%s4 + $0x1c] sm:$0xf]
    %v483 = vunpack.c.l.bf16 %v475
    %v484 = vunpack.c.l.bf16 %v476
    %v485 = vunpack.c.l.bf16 %v477
    %v486 = vunpack.c.l.bf16 %v478
    %v487 = vunpack.c.l.bf16 %v479
    %v488 = vunpack.c.l.bf16 %v480
    %v489 = vunpack.c.l.bf16 %v481
    %v490 = vunpack.c.l.bf16 %v482
    %v491 = vlaneseq
    %v492 = vshrl.u32 %v491, 7
    %v493 = vsub.s32 0, %v492
    %v494 = vrot.slane %v36, %v493
    %vm495 = vcmask 523264
    %v497 = vsel %vm495, %v474, 0
    %499 = vmatprep.subr.mxu0 0.0
    %500 = vmatpush1.msra.mxu0 %v483
    %501 = vmatprep.subr.mxu0 0.0
    %502 = vmatpush1.msra.mxu0 %v484
    %503 = vmatprep.subr.mxu0 0.0
    %504 = vmatpush1.msra.mxu0 %v485
    %505 = vmatprep.subr.mxu0 0.0
    %506 = vmatpush1.msra.mxu0 %v486
    %507 = vmatprep.subr.mxu0 0.0
    %508 = vmatpush1.msra.mxu0 %v487
    %509 = vmatprep.subr.mxu0 0.0
    %510 = vmatpush1.msra.mxu0 %v488
    %511 = vmatprep.subr.mxu0 0.0
    %512 = vmatpush1.msra.mxu0 %v489
    %513 = vmatprep.subr.mxu0 0.0
    %514 = vmatpush1.msra.mxu0 %v490
    %515 = vmatprep.subr.mxu0 0.0
    %516 = vmatpush1.msra.mxu0 0.0
    %517 = vmatprep.subr.mxu0 0.0
    %518 = vmatpush1.msra.mxu0 0.0
    %519 = vmatprep.subr.mxu0 0.0
    %520 = vmatpush1.msra.mxu0 0.0
    %521 = vmatprep.subr.mxu0 0.0
    %522 = vmatpush1.msra.mxu0 0.0
    %523 = vmatprep.subr.mxu0 0.0
    %524 = vmatpush1.msra.mxu0 0.0
    %525 = vmatprep.subr.mxu0 0.0
    %526 = vmatpush1.msra.mxu0 0.0
    %527 = vmatprep.subr.mxu0 0.0
    %528 = vmatpush1.msra.mxu0 0.0
    %529 = vmatprep.subr.mxu0 0.0
    %530 = vmatpush1.msra.mxu0 0.0
    %531 = vmatprep.subr.mxu0 0.0
    %532 = vmatpush1.msra.mxu0 0.0
    %533 = vmatprep.subr.mxu0 0.0
    %534 = vmatpush1.msra.mxu0 0.0
    %535 = vmatprep.subr.mxu0 0.0
    %536 = vmatpush1.msra.mxu0 0.0
    %537 = vmatprep.subr.mxu0 0.0
    %538 = vmatpush1.msra.mxu0 0.0
    %539 = vmatprep.subr.mxu0 0.0
    %540 = vmatpush1.msra.mxu0 0.0
    %541 = vmatprep.subr.mxu0 0.0
    %542 = vmatpush1.msra.mxu0 0.0
    %543 = vmatprep.subr.mxu0 0.0
    %544 = vmatpush1.msra.mxu0 0.0
    %545 = vmatprep.subr.mxu0 0.0
    %546 = vmatpush1.msra.mxu0 0.0
    %547 = vmatprep.subr.mxu0 0.0
    %548 = vmatpush1.msra.mxu0 0.0
    %549 = vmatprep.subr.mxu0 0.0
    %550 = vmatpush1.msra.mxu0 0.0
    %551 = vmatprep.subr.mxu0 0.0
    %552 = vmatpush1.msra.mxu0 0.0
    %553 = vmatprep.subr.mxu0 0.0
    %554 = vmatpush1.msra.mxu0 0.0
    %555 = vmatprep.subr.mxu0 0.0
    %556 = vmatpush1.msra.mxu0 0.0
    %557 = vmatprep.subr.mxu0 0.0
    %558 = vmatpush1.msra.mxu0 0.0
    %559 = vmatprep.subr.mxu0 0.0
    %560 = vmatpush1.msra.mxu0 0.0
    %561 = vmatprep.subr.mxu0 0.0
    %562 = vmatpush1.msra.mxu0 0.0
    %563 = vmatprep.mubr.f32.mxu0 0.0
    %564 = vmatmul.mubr.f32.gmra.mrb[0].mxu0 %v497
    %v565 = vpop.f32.mrb[0].mxu0
    %v566 = vadd.f32 %v494, %v565
    %v567 = vpop.f32.mrb[0].mxu0
    %568 = vdwg.mxu0
    %vm569 = vcmask 254976
    %v570 = vsel %vm569, %v566, 0.0
    %v571 = vrot.slane %v570, 4
    %v572 = vadd.f32 %v570, %v571
    %v573 = vrot.slane %v572, 2
    %v574 = vadd.f32 %v572, %v573
    %v575 = vrot.slane %v574, 1
    %v576 = vadd.f32 %v574, %v575
    %v577 = vrcp.pop 2.0
    %v578 = vmul.f32 %v576, %v577
    %v579 = vld [vmem:[%s4 + $0x20] sm:$0xf]
    %v580 = vld [vmem:[%s4 + $0x24] sm:$0xf]
    %v581 = vld [vmem:[%s4 + $0x28] sm:$0xf]
    %v582 = vld [vmem:[%s4 + $0x2c] sm:$0xf]
    %v583 = vunpack.c.l.bf16 %v579
    %v584 = vunpack.c.l.bf16 %v580
    %v585 = vunpack.c.l.bf16 %v581
    %v586 = vunpack.c.l.bf16 %v582
    %vm587 = vcmask 261120
    %v589 = vsel %vm587, %v578, 0
    %591 = vmatprep.subr.mxu0 0.0
    %592 = vmatpush1.msra.mxu0 %v583
    %593 = vmatprep.subr.mxu0 0.0
    %594 = vmatpush1.msra.mxu0 %v584
    %595 = vmatprep.subr.mxu0 0.0
    %596 = vmatpush1.msra.mxu0 %v585
    %597 = vmatprep.subr.mxu0 0.0
    %598 = vmatpush1.msra.mxu0 %v586
    %599 = vmatprep.subr.mxu0 0.0
    %600 = vmatpush1.msra.mxu0 0.0
    %601 = vmatprep.subr.mxu0 0.0
    %602 = vmatpush1.msra.mxu0 0.0
    %603 = vmatprep.subr.mxu0 0.0
    %604 = vmatpush1.msra.mxu0 0.0
    %605 = vmatprep.subr.mxu0 0.0
    %606 = vmatpush1.msra.mxu0 0.0
    %607 = vmatprep.subr.mxu0 0.0
    %608 = vmatpush1.msra.mxu0 0.0
    %609 = vmatprep.subr.mxu0 0.0
    %610 = vmatpush1.msra.mxu0 0.0
    %611 = vmatprep.subr.mxu0 0.0
    %612 = vmatpush1.msra.mxu0 0.0
    %613 = vmatprep.subr.mxu0 0.0
    %614 = vmatpush1.msra.mxu0 0.0
    %615 = vmatprep.subr.mxu0 0.0
    %616 = vmatpush1.msra.mxu0 0.0
    %617 = vmatprep.subr.mxu0 0.0
    %618 = vmatpush1.msra.mxu0 0.0
    %619 = vmatprep.subr.mxu0 0.0
    %620 = vmatpush1.msra.mxu0 0.0
    %621 = vmatprep.subr.mxu0 0.0
    %622 = vmatpush1.msra.mxu0 0.0
    %623 = vmatprep.subr.mxu0 0.0
    %624 = vmatpush1.msra.mxu0 0.0
    %625 = vmatprep.subr.mxu0 0.0
    %626 = vmatpush1.msra.mxu0 0.0
    %627 = vmatprep.subr.mxu0 0.0
    %628 = vmatpush1.msra.mxu0 0.0
    %629 = vmatprep.subr.mxu0 0.0
    %630 = vmatpush1.msra.mxu0 0.0
    %631 = vmatprep.subr.mxu0 0.0
    %632 = vmatpush1.msra.mxu0 0.0
    %633 = vmatprep.subr.mxu0 0.0
    %634 = vmatpush1.msra.mxu0 0.0
    %635 = vmatprep.subr.mxu0 0.0
    %636 = vmatpush1.msra.mxu0 0.0
    %637 = vmatprep.subr.mxu0 0.0
    %638 = vmatpush1.msra.mxu0 0.0
    %639 = vmatprep.subr.mxu0 0.0
    %640 = vmatpush1.msra.mxu0 0.0
    %641 = vmatprep.subr.mxu0 0.0
    %642 = vmatpush1.msra.mxu0 0.0
    %643 = vmatprep.subr.mxu0 0.0
    %644 = vmatpush1.msra.mxu0 0.0
    %645 = vmatprep.subr.mxu0 0.0
    %646 = vmatpush1.msra.mxu0 0.0
    %647 = vmatprep.subr.mxu0 0.0
    %648 = vmatpush1.msra.mxu0 0.0
    %649 = vmatprep.subr.mxu0 0.0
    %650 = vmatpush1.msra.mxu0 0.0
    %651 = vmatprep.subr.mxu0 0.0
    %652 = vmatpush1.msra.mxu0 0.0
    %653 = vmatprep.subr.mxu0 0.0
    %654 = vmatpush1.msra.mxu0 0.0
    %655 = vmatprep.mubr.f32.mxu0 0.0
    %656 = vmatmul.mubr.f32.gmra.mrb[0].mxu0 %v589
    %v657 = vpop.f32.mrb[0].mxu0
    %v658 = vadd.f32 %v37, %v657
    %v659 = vpop.f32.mrb[0].mxu0
    %660 = vdwg.mxu0
    %v661 = vmax.f32 %v658, 0.0
    %v662 = vld [vmem:[%s4 + $0x30] sm:$0xf]
    %v663 = vld [vmem:[%s4 + $0x34] sm:$0xf]
    %v664 = vld [vmem:[%s4 + $0x38] sm:$0xf]
    %v665 = vld [vmem:[%s4 + $0x3c] sm:$0xf]
    %v666 = vunpack.c.l.bf16 %v662
    %v667 = vunpack.c.l.bf16 %v663
    %v668 = vunpack.c.l.bf16 %v664
    %v669 = vunpack.c.l.bf16 %v665
    %v671 = vsel %vm587, %v661, 0
    %673 = vmatprep.subr.mxu0 0.0
    %674 = vmatpush1.msra.mxu0 %v666
    %675 = vmatprep.subr.mxu0 0.0
    %676 = vmatpush1.msra.mxu0 %v667
    %677 = vmatprep.subr.mxu0 0.0
    %678 = vmatpush1.msra.mxu0 %v668
    %679 = vmatprep.subr.mxu0 0.0
    %680 = vmatpush1.msra.mxu0 %v669
    %681 = vmatprep.subr.mxu0 0.0
    %682 = vmatpush1.msra.mxu0 0.0
    %683 = vmatprep.subr.mxu0 0.0
    %684 = vmatpush1.msra.mxu0 0.0
    %685 = vmatprep.subr.mxu0 0.0
    %686 = vmatpush1.msra.mxu0 0.0
    %687 = vmatprep.subr.mxu0 0.0
    %688 = vmatpush1.msra.mxu0 0.0
    %689 = vmatprep.subr.mxu0 0.0
    %690 = vmatpush1.msra.mxu0 0.0
    %691 = vmatprep.subr.mxu0 0.0
    %692 = vmatpush1.msra.mxu0 0.0
    %693 = vmatprep.subr.mxu0 0.0
    %694 = vmatpush1.msra.mxu0 0.0
    %695 = vmatprep.subr.mxu0 0.0
    %696 = vmatpush1.msra.mxu0 0.0
    %697 = vmatprep.subr.mxu0 0.0
    %698 = vmatpush1.msra.mxu0 0.0
    %699 = vmatprep.subr.mxu0 0.0
    %700 = vmatpush1.msra.mxu0 0.0
    %701 = vmatprep.subr.mxu0 0.0
    %702 = vmatpush1.msra.mxu0 0.0
    %703 = vmatprep.subr.mxu0 0.0
    %704 = vmatpush1.msra.mxu0 0.0
    %705 = vmatprep.subr.mxu0 0.0
    %706 = vmatpush1.msra.mxu0 0.0
    %707 = vmatprep.subr.mxu0 0.0
    %708 = vmatpush1.msra.mxu0 0.0
    %709 = vmatprep.subr.mxu0 0.0
    %710 = vmatpush1.msra.mxu0 0.0
    %711 = vmatprep.subr.mxu0 0.0
    %712 = vmatpush1.msra.mxu0 0.0
    %713 = vmatprep.subr.mxu0 0.0
    %714 = vmatpush1.msra.mxu0 0.0
    %715 = vmatprep.subr.mxu0 0.0
    %716 = vmatpush1.msra.mxu0 0.0
    %717 = vmatprep.subr.mxu0 0.0
    %718 = vmatpush1.msra.mxu0 0.0
    %719 = vmatprep.subr.mxu0 0.0
    %720 = vmatpush1.msra.mxu0 0.0
    %721 = vmatprep.subr.mxu0 0.0
    %722 = vmatpush1.msra.mxu0 0.0
    %723 = vmatprep.subr.mxu0 0.0
    %724 = vmatpush1.msra.mxu0 0.0
    %725 = vmatprep.subr.mxu0 0.0
    %726 = vmatpush1.msra.mxu0 0.0
    %727 = vmatprep.subr.mxu0 0.0
    %728 = vmatpush1.msra.mxu0 0.0
    %729 = vmatprep.subr.mxu0 0.0
    %730 = vmatpush1.msra.mxu0 0.0
    %731 = vmatprep.subr.mxu0 0.0
    %732 = vmatpush1.msra.mxu0 0.0
    %733 = vmatprep.subr.mxu0 0.0
    %734 = vmatpush1.msra.mxu0 0.0
    %735 = vmatprep.subr.mxu0 0.0
    %736 = vmatpush1.msra.mxu0 0.0
    %737 = vmatprep.mubr.f32.mxu0 0.0
    %738 = vmatmul.mubr.f32.gmra.mrb[0].mxu0 %v671
    %v739 = vpop.f32.mrb[0].mxu0
    %v740 = vadd.f32 %v38, %v739
    %v741 = vpop.f32.mrb[0].mxu0
    %742 = vdwg.mxu0
    %v743 = vxor.u32 %v740, 2147483648
    %v744 = vmul.f32 %v743, 1.442695
    %v745 = vpow.pop %v744
    %v746 = vadd.f32 %v745, 1.0
    %v747 = vrcp.pop %v746
    %v748 = vmul.f32 1.0, %v747
    %v749 = vmul.f32 %v748, 0.9
    %v750 = vadd.f32 %v749, 0.1
    %v751 = vlaneseq
    %v752 = vand.u32 %v751, 127
    %vm753 = vcmp.ge.s32.totalorder %v752, 16
    %vm754 = vcmp.lt.s32.totalorder %v752, 32
    %vm755 = vmand %vm753, %vm754
    %v756 = vsel %vm755, %v750, %v740
    %757 = vst [vmem:[%s5] sm:$0x1] %v756
    %759 = vrot.lane.b32.xlu0 %v42, 16
    %v760 = vpop.permute.xlu0 %759
    %v762 = vmul.f32 %v750, %v760
    %764 = vrot.lane.b32.xlu0 %v762, 112
    %v765 = vpop.permute.xlu0 %764
    %v767 = vadd.f32 %v740, %v765
    %v768 = vld [vmem:[%s4 + $0x40] sm:$0xf]
    %v769 = vld [vmem:[%s4 + $0x44] sm:$0xf]
    %v770 = vunpack.c.l.bf16 %v768
    %v771 = vunpack.c.l.bf16 %v769
    %vm772 = vcmask 130048
    %v774 = vsel %vm772, %v767, 0
    %776 = vmatprep.subr.mxu0 0.0
    %777 = vmatpush1.msra.mxu0 %v770
    %778 = vmatprep.subr.mxu0 0.0
    %779 = vmatpush1.msra.mxu0 %v771
    %780 = vmatprep.subr.mxu0 0.0
    %781 = vmatpush1.msra.mxu0 0.0
    %782 = vmatprep.subr.mxu0 0.0
    %783 = vmatpush1.msra.mxu0 0.0
    %784 = vmatprep.subr.mxu0 0.0
    %785 = vmatpush1.msra.mxu0 0.0
    %786 = vmatprep.subr.mxu0 0.0
    %787 = vmatpush1.msra.mxu0 0.0
    %788 = vmatprep.subr.mxu0 0.0
    %789 = vmatpush1.msra.mxu0 0.0
    %790 = vmatprep.subr.mxu0 0.0
    %791 = vmatpush1.msra.mxu0 0.0
    %792 = vmatprep.subr.mxu0 0.0
    %793 = vmatpush1.msra.mxu0 0.0
    %794 = vmatprep.subr.mxu0 0.0
    %795 = vmatpush1.msra.mxu0 0.0
    %796 = vmatprep.subr.mxu0 0.0
    %797 = vmatpush1.msra.mxu0 0.0
    %798 = vmatprep.subr.mxu0 0.0
    %799 = vmatpush1.msra.mxu0 0.0
    %800 = vmatprep.subr.mxu0 0.0
    %801 = vmatpush1.msra.mxu0 0.0
    %802 = vmatprep.subr.mxu0 0.0
    %803 = vmatpush1.msra.mxu0 0.0
    %804 = vmatprep.subr.mxu0 0.0
    %805 = vmatpush1.msra.mxu0 0.0
    %806 = vmatprep.subr.mxu0 0.0
    %807 = vmatpush1.msra.mxu0 0.0
    %808 = vmatprep.subr.mxu0 0.0
    %809 = vmatpush1.msra.mxu0 0.0
    %810 = vmatprep.subr.mxu0 0.0
    %811 = vmatpush1.msra.mxu0 0.0
    %812 = vmatprep.subr.mxu0 0.0
    %813 = vmatpush1.msra.mxu0 0.0
    %814 = vmatprep.subr.mxu0 0.0
    %815 = vmatpush1.msra.mxu0 0.0
    %816 = vmatprep.subr.mxu0 0.0
    %817 = vmatpush1.msra.mxu0 0.0
    %818 = vmatprep.subr.mxu0 0.0
    %819 = vmatpush1.msra.mxu0 0.0
    %820 = vmatprep.subr.mxu0 0.0
    %821 = vmatpush1.msra.mxu0 0.0
    %822 = vmatprep.subr.mxu0 0.0
    %823 = vmatpush1.msra.mxu0 0.0
    %824 = vmatprep.subr.mxu0 0.0
    %825 = vmatpush1.msra.mxu0 0.0
    %826 = vmatprep.subr.mxu0 0.0
    %827 = vmatpush1.msra.mxu0 0.0
    %828 = vmatprep.subr.mxu0 0.0
    %829 = vmatpush1.msra.mxu0 0.0
    %830 = vmatprep.subr.mxu0 0.0
    %831 = vmatpush1.msra.mxu0 0.0
    %832 = vmatprep.subr.mxu0 0.0
    %833 = vmatpush1.msra.mxu0 0.0
    %834 = vmatprep.subr.mxu0 0.0
    %835 = vmatpush1.msra.mxu0 0.0
    %836 = vmatprep.subr.mxu0 0.0
    %837 = vmatpush1.msra.mxu0 0.0
    %838 = vmatprep.subr.mxu0 0.0
    %839 = vmatpush1.msra.mxu0 0.0
    %840 = vmatprep.mubr.f32.mxu0 0.0
    %841 = vmatmul.mubr.f32.gmra.mrb[0].mxu0 %v774
    %v842 = vpop.f32.mrb[0].mxu0
    %v843 = vadd.f32 %v39, %v842
    %v844 = vpop.f32.mrb[0].mxu0
    %845 = vdwg.mxu0
    %v846 = vlaneseq
    %v847 = vshrl.u32 %v846, 7
    %v848 = vsub.s32 0, %v847
    %v849 = vrot.slane %v843, %v848
    %851 = vrot.lane.b32.xlu0 %v849, 64
    %v852 = vpop.permute.xlu0 %851
    %v854 = vadd.f32 %v454, %v852
    %v855 = vmax.f32 %v854, 0.0
    %v856 = vld [vmem:[%s4 + $0x48] sm:$0xf]
    %v857 = vld [vmem:[%s4 + $0x4c] sm:$0xf]
    %v858 = vld [vmem:[%s4 + $0x50] sm:$0xf]
    %v859 = vld [vmem:[%s4 + $0x54] sm:$0xf]
    %v860 = vunpack.c.l.bf16 %v856
    %v861 = vunpack.c.l.bf16 %v857
    %v862 = vunpack.c.l.bf16 %v858
    %v863 = vunpack.c.l.bf16 %v859
    %v864 = vlaneseq
    %v865 = vshrl.u32 %v864, 7
    %v866 = vsub.s32 0, %v865
    %v867 = vrot.slane %v40, %v866
    %v869 = vrot.slane %v855, 2
    %870 = vrot.lane.b32.xlu0 %v869, 64
    %v871 = vpop.permute.xlu0 %870
    %v872 = vsel %vm587, %v871, 0
    %874 = vmatprep.subr.mxu0 0.0
    %875 = vmatpush1.msra.mxu0 %v860
    %876 = vmatprep.subr.mxu0 0.0
    %877 = vmatpush1.msra.mxu0 %v861
    %878 = vmatprep.subr.mxu0 0.0
    %879 = vmatpush1.msra.mxu0 %v862
    %880 = vmatprep.subr.mxu0 0.0
    %881 = vmatpush1.msra.mxu0 %v863
    %882 = vmatprep.subr.mxu0 0.0
    %883 = vmatpush1.msra.mxu0 0.0
    %884 = vmatprep.subr.mxu0 0.0
    %885 = vmatpush1.msra.mxu0 0.0
    %886 = vmatprep.subr.mxu0 0.0
    %887 = vmatpush1.msra.mxu0 0.0
    %888 = vmatprep.subr.mxu0 0.0
    %889 = vmatpush1.msra.mxu0 0.0
    %890 = vmatprep.subr.mxu0 0.0
    %891 = vmatpush1.msra.mxu0 0.0
    %892 = vmatprep.subr.mxu0 0.0
    %893 = vmatpush1.msra.mxu0 0.0
    %894 = vmatprep.subr.mxu0 0.0
    %895 = vmatpush1.msra.mxu0 0.0
    %896 = vmatprep.subr.mxu0 0.0
    %897 = vmatpush1.msra.mxu0 0.0
    %898 = vmatprep.subr.mxu0 0.0
    %899 = vmatpush1.msra.mxu0 0.0
    %900 = vmatprep.subr.mxu0 0.0
    %901 = vmatpush1.msra.mxu0 0.0
    %902 = vmatprep.subr.mxu0 0.0
    %903 = vmatpush1.msra.mxu0 0.0
    %904 = vmatprep.subr.mxu0 0.0
    %905 = vmatpush1.msra.mxu0 0.0
    %906 = vmatprep.subr.mxu0 0.0
    %907 = vmatpush1.msra.mxu0 0.0
    %908 = vmatprep.subr.mxu0 0.0
    %909 = vmatpush1.msra.mxu0 0.0
    %910 = vmatprep.subr.mxu0 0.0
    %911 = vmatpush1.msra.mxu0 0.0
    %912 = vmatprep.subr.mxu0 0.0
    %913 = vmatpush1.msra.mxu0 0.0
    %914 = vmatprep.subr.mxu0 0.0
    %915 = vmatpush1.msra.mxu0 0.0
    %916 = vmatprep.subr.mxu0 0.0
    %917 = vmatpush1.msra.mxu0 0.0
    %918 = vmatprep.subr.mxu0 0.0
    %919 = vmatpush1.msra.mxu0 0.0
    %920 = vmatprep.subr.mxu0 0.0
    %921 = vmatpush1.msra.mxu0 0.0
    %922 = vmatprep.subr.mxu0 0.0
    %923 = vmatpush1.msra.mxu0 0.0
    %924 = vmatprep.subr.mxu0 0.0
    %925 = vmatpush1.msra.mxu0 0.0
    %926 = vmatprep.subr.mxu0 0.0
    %927 = vmatpush1.msra.mxu0 0.0
    %928 = vmatprep.subr.mxu0 0.0
    %929 = vmatpush1.msra.mxu0 0.0
    %930 = vmatprep.subr.mxu0 0.0
    %931 = vmatpush1.msra.mxu0 0.0
    %932 = vmatprep.subr.mxu0 0.0
    %933 = vmatpush1.msra.mxu0 0.0
    %934 = vmatprep.subr.mxu0 0.0
    %935 = vmatpush1.msra.mxu0 0.0
    %936 = vmatprep.subr.mxu0 0.0
    %937 = vmatpush1.msra.mxu0 0.0
    %938 = vmatprep.mubr.f32.mxu0 0.0
    %939 = vmatmul.mubr.f32.gmra.mrb[0].mxu0 %v872
    %v940 = vpop.f32.mrb[0].mxu0
    %v941 = vadd.f32 %v867, %v940
    %v942 = vpop.f32.mrb[0].mxu0
    %943 = vdwg.mxu0
    %v944 = vmax.f32 %v941, 0.0
    %v945 = vld [vmem:[%s4 + $0x58] sm:$0xf]
    %v946 = vld [vmem:[%s4 + $0x5c] sm:$0xf]
    %v947 = vld [vmem:[%s4 + $0x60] sm:$0xf]
    %v948 = vld [vmem:[%s4 + $0x64] sm:$0xf]
    %v949 = vunpack.c.l.bf16 %v945
    %v950 = vunpack.c.l.bf16 %v946
    %v951 = vunpack.c.l.bf16 %v947
    %v952 = vunpack.c.l.bf16 %v948
    %v953 = vlaneseq
    %v954 = vshrl.u32 %v953, 7
    %v955 = vsub.s32 0, %v954
    %v956 = vrot.slane %v41, %v955
    %v958 = vsel %vm587, %v944, 0
    %960 = vmatprep.subr.mxu0 0.0
    %961 = vmatpush1.msra.mxu0 %v949
    %962 = vmatprep.subr.mxu0 0.0
    %963 = vmatpush1.msra.mxu0 %v950
    %964 = vmatprep.subr.mxu0 0.0
    %965 = vmatpush1.msra.mxu0 %v951
    %966 = vmatprep.subr.mxu0 0.0
    %967 = vmatpush1.msra.mxu0 %v952
    %968 = vmatprep.subr.mxu0 0.0
    %969 = vmatpush1.msra.mxu0 0.0
    %970 = vmatprep.subr.mxu0 0.0
    %971 = vmatpush1.msra.mxu0 0.0
    %972 = vmatprep.subr.mxu0 0.0
    %973 = vmatpush1.msra.mxu0 0.0
    %974 = vmatprep.subr.mxu0 0.0
    %975 = vmatpush1.msra.mxu0 0.0
    %976 = vmatprep.subr.mxu0 0.0
    %977 = vmatpush1.msra.mxu0 0.0
    %978 = vmatprep.subr.mxu0 0.0
    %979 = vmatpush1.msra.mxu0 0.0
    %980 = vmatprep.subr.mxu0 0.0
    %981 = vmatpush1.msra.mxu0 0.0
    %982 = vmatprep.subr.mxu0 0.0
    %983 = vmatpush1.msra.mxu0 0.0
    %984 = vmatprep.subr.mxu0 0.0
    %985 = vmatpush1.msra.mxu0 0.0
    %986 = vmatprep.subr.mxu0 0.0
    %987 = vmatpush1.msra.mxu0 0.0
    %988 = vmatprep.subr.mxu0 0.0
    %989 = vmatpush1.msra.mxu0 0.0
    %990 = vmatprep.subr.mxu0 0.0
    %991 = vmatpush1.msra.mxu0 0.0
    %992 = vmatprep.subr.mxu0 0.0
    %993 = vmatpush1.msra.mxu0 0.0
    %994 = vmatprep.subr.mxu0 0.0
    %995 = vmatpush1.msra.mxu0 0.0
    %996 = vmatprep.subr.mxu0 0.0
    %997 = vmatpush1.msra.mxu0 0.0
    %998 = vmatprep.subr.mxu0 0.0
    %999 = vmatpush1.msra.mxu0 0.0
    %1000 = vmatprep.subr.mxu0 0.0
    %1001 = vmatpush1.msra.mxu0 0.0
    %1002 = vmatprep.subr.mxu0 0.0
    %1003 = vmatpush1.msra.mxu0 0.0
    %1004 = vmatprep.subr.mxu0 0.0
    %1005 = vmatpush1.msra.mxu0 0.0
    %1006 = vmatprep.subr.mxu0 0.0
    %1007 = vmatpush1.msra.mxu0 0.0
    %1008 = vmatprep.subr.mxu0 0.0
    %1009 = vmatpush1.msra.mxu0 0.0
    %1010 = vmatprep.subr.mxu0 0.0
    %1011 = vmatpush1.msra.mxu0 0.0
    %1012 = vmatprep.subr.mxu0 0.0
    %1013 = vmatpush1.msra.mxu0 0.0
    %1014 = vmatprep.subr.mxu0 0.0
    %1015 = vmatpush1.msra.mxu0 0.0
    %1016 = vmatprep.subr.mxu0 0.0
    %1017 = vmatpush1.msra.mxu0 0.0
    %1018 = vmatprep.subr.mxu0 0.0
    %1019 = vmatpush1.msra.mxu0 0.0
    %1020 = vmatprep.subr.mxu0 0.0
    %1021 = vmatpush1.msra.mxu0 0.0
    %1022 = vmatprep.subr.mxu0 0.0
    %1023 = vmatpush1.msra.mxu0 0.0
    %1024 = vmatprep.mubr.f32.mxu0 0.0
    %1025 = vmatmul.mubr.f32.gmra.mrb[0].mxu0 %v958
    %v1026 = vpop.f32.mrb[0].mxu0
    %v1027 = vadd.f32 %v956, %v1026
    %v1028 = vpop.f32.mrb[0].mxu0
    %1029 = vdwg.mxu0
    %v1030 = vmax.f32 %v1027, 0.0
    %vm1031 = vcmp.ne.f32.partialorder %v1027, %v1027
    %v1032 = vadd.f32 %v1027, 0.0
    %v1033 = vand.u32 2147483647, %v1027
    %v1034 = vsub.f32 0.0, %v1033
    %v1035 = vmul.f32 %v1034, 1.442695
    %v1036 = vpow.pop %v1035
    %v1037 = vadd.f32 %v1036, 1.0
    %v1038 = vlog2.pop %v1037
    %v1039 = vmul.f32 %v1038, 0.6931472
    %v1040 = vmul.f32 -0.5, %v1036
    %v1041 = vadd.f32 %v1040, 1.0
    %v1042 = vmul.f32 %v1041, %v1036
    %v1043 = vand.u32 2147483647, %v1036
    %vm1044 = vcmp.lt.f32.partialorder %v1043, 0.0004427343
    %v1045 = vsel %vm1044, %v1042, %v1039
    %v1046 = vadd.f32 %v1030, %v1045
    %v1047 = vsel %vm1031, %v1032, %v1046
    %v1048 = vmul.f32 %v1047, 0.9
    %v1049 = vadd.f32 %v1048, 0.1
    %vm1050 = vcmp.ge.s32.totalorder %v752, 1
    %vm1051 = vcmp.lt.s32.totalorder %v752, 2
    %vm1052 = vmand %vm1050, %vm1051
    %v1053 = vsel %vm1052, %v1049, %v1027
    %1054 = vst [vmem:[%s5 + $0x1] sm:$0x3] %v1053
    // Predicated region
    $region26: #{neural_process_forward.1} parent=1 // pred_check
      _
    $region27: #{neural_process_forward.1} parent=1 // pred_check_branch
      %1056 = sbr.rel (0) target = $region29
    $region28: #{neural_process_forward.1} parent=1 // pred_region
      _
    $region29: #{neural_process_forward.1} parent=1 // pred_fallthru
      _
    // Predicated region
    $region30: #{neural_process_forward.1} parent=1 // pred_check
      _
    $region31: #{neural_process_forward.1} parent=1 // pred_check_branch
      %1058 = sbr.rel (0) target = $region33
    $region32: #{neural_process_forward.1} parent=1 // pred_region
      _
    $region33: #{neural_process_forward.1} parent=1 // pred_fallthru
      _
    %1059 = vsyncpa [#allocation3], 1

</llo_original>
